<compile_context>
chip_gen: v7x
topology: tpu7x:2x2x1
jax: 0.10.0
libtpu: 0.0.40
codegen_flags: <defaults>
</compile_context>

<pallas_src>
import jax
import jax.numpy as jnp
from jax.experimental import pallas as pl
from jax.experimental.pallas import tpu as pltpu

EPS = 1e-5


def basic_block_kernel(x_ref, w1_ref, w2_ref, b1_ref, b2_ref, o_ref):
    # x_ref : (Nb, C, L)  f32   activations, native NCL layout
    # w1_ref: (3, C, Cin) bf16  per-tap conv1 weights (BN1 scale folded in)
    # w2_ref: (3, C, C)   bf16  per-tap conv2 weights (BN2 scale folded in)
    # b1/b2 : (C, 1)      f32   folded BatchNorm biases
    # o_ref : (Nb, C, L)
    nb, _, L = x_ref.shape

    # Conv halo masks, built once per grid step at (1, L): lane 0 has no left
    # neighbour, lane L-1 has no right neighbour (zero padding of the conv).
    lane = jax.lax.broadcasted_iota(jnp.int32, (1, L), 1)
    has_left = lane != 0
    has_right = lane != (L - 1)

    # Grid-invariant operands: load once, reuse across the batch loop.
    w1 = [w1_ref[k] for k in range(3)]   # each (C, Cin) bf16
    w2 = [w2_ref[k] for k in range(3)]   # each (C, C)  bf16
    b1 = b1_ref[...]                     # (C, 1) f32
    b2 = b2_ref[...]                     # (C, 1) f32

    def conv3_taps(h, w_taps):
        # 3-tap conv as three accumulating MXU dots (no (3C, L) concat).
        # tap0 * x[l-1] + tap1 * x[l] + tap2 * x[l+1], zero padded at the ends.
        h_l = jnp.where(has_left, pltpu.roll(h, shift=1, axis=1), 0.0)
        h_r = jnp.where(has_right, pltpu.roll(h, shift=L - 1, axis=1), 0.0)
        acc = jnp.dot(w_taps[0], h_l.astype(jnp.bfloat16),
                      preferred_element_type=jnp.float32)
        acc += jnp.dot(w_taps[1], h.astype(jnp.bfloat16),
                       preferred_element_type=jnp.float32)
        acc += jnp.dot(w_taps[2], h_r.astype(jnp.bfloat16),
                       preferred_element_type=jnp.float32)
        return acc

    for b in range(nb):                  # static unroll; nb is kept small
        x = x_ref[b].astype(jnp.float32)                    # (C, L)
        h = jnp.maximum(conv3_taps(x, w1) + b1, 0.0)        # conv1+bn1+relu
        out = conv3_taps(h, w2) + b2 + x                    # conv2+bn2+residual
        o_ref[b] = jnp.maximum(out, 0.0).astype(o_ref.dtype)


def fold_bn(gamma, beta, running_mean, running_var, eps=EPS):
    scale = gamma / jnp.sqrt(running_var + eps)
    bias = beta - running_mean * scale
    return scale.astype(jnp.float32), bias.astype(jnp.float32)


def _pick_batch_tile(N, C, L, vmem_budget=40 * 1024 * 1024, max_unroll=8):
    """Batches per grid step: the largest divisor of N that (a) fits a
    conservative cross-generation VMEM budget with double-buffered in/out
    blocks, (b) keeps the in-kernel unroll modest, and (c) leaves >= 2 grid
    steps when possible (v7x has two TensorCores)."""
    row_bytes = C * L * 4                                   # one (C, L) f32 tile
    weight_bytes = 2 * (2 * 3 * C * C * 2 + 2 * C * 4)      # dbl-buffered bf16 W + f32 b
    temp_bytes = 12 * row_bytes                             # in-kernel temporaries

    def fits(nb):
        return weight_bytes + temp_bytes + 2 * 2 * nb * row_bytes <= vmem_budget

    cands = [d for d in range(1, N + 1)
             if N % d == 0 and d <= max_unroll and fits(d)]
    if not cands:
        cands = [1]
    multi = [d for d in cands if N // d >= 2]
    pool = sorted(multi if multi else cands)
    nb = pool[0]
    for d in pool:                        # grow until the per-step slab is big
        nb = d                            # enough to amortize per-step overhead
        if d * row_bytes >= 2 * 1024 * 1024:
            break
    return nb


def basic_block_pallas(x, w1, w2, bn1_params, bn2_params):
    """x: (N, Cin, L) f32.  w1: (C, Cin, 3), w2: (C, C, 3).  Returns (N, C, L)."""
    N, Cin, L = x.shape
    C = w1.shape[0]
    assert Cin == C, "downsample=None requires inchannels == channels"

    s1, b1 = fold_bn(*bn1_params)
    s2, b2 = fold_bn(*bn2_params)

    # Fold BN scale into the conv weights and split per tap: (3, Cout, Cin),
    # cast to bf16 for the MXU (accumulation stays f32 inside the kernel).
    w1t = jnp.transpose(w1.astype(jnp.float32) * s1[:, None, None],
                        (2, 0, 1)).astype(jnp.bfloat16)
    w2t = jnp.transpose(w2.astype(jnp.float32) * s2[:, None, None],
                        (2, 0, 1)).astype(jnp.bfloat16)
    b1c = b1.reshape(C, 1)
    b2c = b2.reshape(C, 1)

    Nb = _pick_batch_tile(N, C, L)
    grid = (N // Nb,)

    return pl.pallas_call(
        basic_block_kernel,
        out_shape=jax.ShapeDtypeStruct((N, C, L), x.dtype),
        grid_spec=pltpu.PrefetchScalarGridSpec(
            num_scalar_prefetch=0,
            grid=grid,
            in_specs=[
                pl.BlockSpec((Nb, C, L), lambda i: (i, 0, 0)),    # activations
                pl.BlockSpec((3, C, Cin), lambda i: (0, 0, 0)),   # conv1 taps
                pl.BlockSpec((3, C, C), lambda i: (0, 0, 0)),     # conv2 taps
                pl.BlockSpec((C, 1), lambda i: (0, 0)),           # bias1
                pl.BlockSpec((C, 1), lambda i: (0, 0)),           # bias2
            ],
            out_specs=pl.BlockSpec((Nb, C, L), lambda i: (i, 0, 0)),
        ),
        compiler_params=pltpu.CompilerParams(
            dimension_semantics=("parallel",),
            vmem_limit_bytes=48 * 1024 * 1024,   # safe on v5e/v6e (128 MiB) and v7x (64 MiB)
        ),
    )(x, w1t, w2t, b1c, b2c)


# ---------------- pure-JAX reference (for correctness check) ----------------
def ref_forward(x, w1, w2, bn1_params, bn2_params):
    def conv3(x, w):
        return jax.lax.conv_general_dilated(
            x, w, window_strides=(1,), padding=((1, 1),),
            dimension_numbers=("NCH", "OIH", "NCH"))

    def bn(x, params):
        gamma, beta, mean, var = params
        return (x - mean[None, :, None]) / jnp.sqrt(var[None, :, None] + EPS) \
               * gamma[None, :, None] + beta[None, :, None]

    out = jax.nn.relu(bn(conv3(x, w1), bn1_params))
    out = bn(conv3(out, w2), bn2_params)
    return jax.nn.relu(out + x)


def _make_case(key, N, C, L):
    k = jax.random.split(key, 8)
    x = jax.random.normal(k[0], (N, C, L), dtype=jnp.float32)
    w1 = 0.1 * jax.random.normal(k[1], (C, C, 3), dtype=jnp.float32)
    w2 = 0.1 * jax.random.normal(k[2], (C, C, 3), dtype=jnp.float32)
    bn1 = (1.0 + 0.1 * jax.random.normal(k[3], (C,), dtype=jnp.float32),     # gamma
           0.1 * jax.random.normal(k[4], (C,), dtype=jnp.float32),           # beta
           0.1 * jax.random.normal(k[5], (C,), dtype=jnp.float32),           # mean
           jnp.abs(jax.random.normal(k[6], (C,), dtype=jnp.float32)) + 0.5)  # var
    bn2 = (1.0 + 0.1 * jax.random.normal(k[7], (C,), dtype=jnp.float32),
           jnp.zeros((C,), jnp.float32),
           jnp.zeros((C,), jnp.float32),
           jnp.ones((C,), jnp.float32))
    return x, w1, w2, bn1, bn2


if __name__ == "__main__":
    key = jax.random.PRNGKey(0)
    k_small, k_big = jax.random.split(key)

    # bf16 MXU operands -> tolerance looser than the f32-only version.
    ATOL = 5e-2
    RTOL = 5e-2

    # Small case: N=2, C=4, L=16 (Nb=1, 2 grid steps).
    x, w1, w2, bn1, bn2 = _make_case(k_small, 2, 4, 16)
    out = jax.block_until_ready(basic_block_pallas(x, w1, w2, bn1, bn2))
    ref = ref_forward(x, w1, w2, bn1, bn2)
    assert out.shape == x.shape
    assert jnp.allclose(out, ref, atol=ATOL, rtol=RTOL), \
        f"small case max err {jnp.max(jnp.abs(out - ref))}"

    # Lane-dense, multi-batch-per-block case: N=8, C=8, L=128
    # (Nb=4, 2 grid steps, in-kernel batch loop exercised).
    x, w1, w2, bn1, bn2 = _make_case(k_big, 8, 8, 128)
    out = jax.block_until_ready(basic_block_pallas(x, w1, w2, bn1, bn2))
    ref = ref_forward(x, w1, w2, bn1, bn2)
    assert out.shape == x.shape
    assert jnp.allclose(out, ref, atol=ATOL, rtol=RTOL), \
        f"aligned case max err {jnp.max(jnp.abs(out - ref))}"

    print("KERNEL_OK")
</pallas_src>

<mosaic_0001>
module attributes {stable_mosaic.version = 11 : i64} {
  func.func @basic_block_kernel(%arg0: i32, %arg1: memref<1x4x16xf32, #tpu.memory_space<vmem>>, %arg2: memref<3x4x4xbf16, #tpu.memory_space<vmem>>, %arg3: memref<3x4x4xbf16, #tpu.memory_space<vmem>>, %arg4: memref<4x1xf32, #tpu.memory_space<vmem>>, %arg5: memref<4x1xf32, #tpu.memory_space<vmem>>, %arg6: memref<1x4x16xf32, #tpu.memory_space<vmem>>) attributes {dimension_semantics = [#tpu.dimension_semantics<parallel>], iteration_bounds = array<i64: 2>, scalar_prefetch = 0 : i64, scratch_operands = 0 : i64, tpu.core_type = #tpu.core_type<tc>, window_params = [{transform_indices = @transform_0, window_bounds = array<i64: 1, 4, 16>}, {pipeline_mode = #tpu.pipeline_mode<synchronous>, transform_indices = @transform_1, window_bounds = array<i64: 3, 4, 4>}, {pipeline_mode = #tpu.pipeline_mode<synchronous>, transform_indices = @transform_2, window_bounds = array<i64: 3, 4, 4>}, {pipeline_mode = #tpu.pipeline_mode<synchronous>, transform_indices = @transform_3, window_bounds = array<i64: 4, 1>}, {pipeline_mode = #tpu.pipeline_mode<synchronous>, transform_indices = @transform_4, window_bounds = array<i64: 4, 1>}, {transform_indices = @transform_5, window_bounds = array<i64: 1, 4, 16>}]} {
    %0 = tpu.iota {dimensions = array<i32: 1>} : vector<1x16xi32>
    %c0_i32 = arith.constant 0 : i32
    %1 = vector.broadcast %c0_i32 : i32 to vector<1x16xi32>
    %2 = arith.cmpi ne, %0, %1 : vector<1x16xi32>
    %c15_i32 = arith.constant 15 : i32
    %3 = vector.broadcast %c15_i32 : i32 to vector<1x16xi32>
    %4 = arith.cmpi ne, %0, %3 : vector<1x16xi32>
    %c0 = arith.constant 0 : index
    %c0_0 = arith.constant 0 : index
    %c0_1 = arith.constant 0 : index
    %5 = vector.load %arg2[%c0, %c0_0, %c0_1] : memref<3x4x4xbf16, #tpu.memory_space<vmem>>, vector<1x4x4xbf16>
    %6 = vector.shape_cast %5 : vector<1x4x4xbf16> to vector<4x4xbf16>
    %c1 = arith.constant 1 : index
    %c0_2 = arith.constant 0 : index
    %c0_3 = arith.constant 0 : index
    %7 = vector.load %arg2[%c1, %c0_2, %c0_3] : memref<3x4x4xbf16, #tpu.memory_space<vmem>>, vector<1x4x4xbf16>
    %8 = vector.shape_cast %7 : vector<1x4x4xbf16> to vector<4x4xbf16>
    %c2 = arith.constant 2 : index
    %c0_4 = arith.constant 0 : index
    %c0_5 = arith.constant 0 : index
    %9 = vector.load %arg2[%c2, %c0_4, %c0_5] : memref<3x4x4xbf16, #tpu.memory_space<vmem>>, vector<1x4x4xbf16>
    %10 = vector.shape_cast %9 : vector<1x4x4xbf16> to vector<4x4xbf16>
    %c0_6 = arith.constant 0 : index
    %c0_7 = arith.constant 0 : index
    %c0_8 = arith.constant 0 : index
    %11 = vector.load %arg3[%c0_6, %c0_7, %c0_8] : memref<3x4x4xbf16, #tpu.memory_space<vmem>>, vector<1x4x4xbf16>
    %12 = vector.shape_cast %11 : vector<1x4x4xbf16> to vector<4x4xbf16>
    %c1_9 = arith.constant 1 : index
    %c0_10 = arith.constant 0 : index
    %c0_11 = arith.constant 0 : index
    %13 = vector.load %arg3[%c1_9, %c0_10, %c0_11] : memref<3x4x4xbf16, #tpu.memory_space<vmem>>, vector<1x4x4xbf16>
    %14 = vector.shape_cast %13 : vector<1x4x4xbf16> to vector<4x4xbf16>
    %c2_12 = arith.constant 2 : index
    %c0_13 = arith.constant 0 : index
    %c0_14 = arith.constant 0 : index
    %15 = vector.load %arg3[%c2_12, %c0_13, %c0_14] : memref<3x4x4xbf16, #tpu.memory_space<vmem>>, vector<1x4x4xbf16>
    %16 = vector.shape_cast %15 : vector<1x4x4xbf16> to vector<4x4xbf16>
    %c0_15 = arith.constant 0 : index
    %c0_16 = arith.constant 0 : index
    %17 = vector.load %arg4[%c0_15, %c0_16] : memref<4x1xf32, #tpu.memory_space<vmem>>, vector<4x1xf32>
    %c0_17 = arith.constant 0 : index
    %c0_18 = arith.constant 0 : index
    %18 = vector.load %arg5[%c0_17, %c0_18] : memref<4x1xf32, #tpu.memory_space<vmem>>, vector<4x1xf32>
    %c0_19 = arith.constant 0 : index
    %c0_20 = arith.constant 0 : index
    %c0_21 = arith.constant 0 : index
    %19 = vector.load %arg1[%c0_19, %c0_20, %c0_21] : memref<1x4x16xf32, #tpu.memory_space<vmem>>, vector<1x4x16xf32>
    %20 = vector.shape_cast %19 : vector<1x4x16xf32> to vector<4x16xf32>
    %c1_i32 = arith.constant 1 : i32
    %21 = tpu.dynamic_rotate %20 by %c1_i32 dim 1 : vector<4x16xf32>, i32 -> vector<4x16xf32>
    %cst = arith.constant 0.000000e+00 : f32
    %22 = vector.shape_cast %2 : vector<1x16xi1> to vector<1x16xi1>
    %23 = vector.broadcast %22 : vector<1x16xi1> to vector<4x16xi1>
    %24 = vector.broadcast %cst : f32 to vector<4x16xf32>
    %25 = arith.select %23, %21, %24 : vector<4x16xi1>, vector<4x16xf32>
    %c15_i32_22 = arith.constant 15 : i32
    %26 = tpu.dynamic_rotate %20 by %c15_i32_22 dim 1 : vector<4x16xf32>, i32 -> vector<4x16xf32>
    %cst_23 = arith.constant 0.000000e+00 : f32
    %27 = vector.shape_cast %4 : vector<1x16xi1> to vector<1x16xi1>
    %28 = vector.broadcast %27 : vector<1x16xi1> to vector<4x16xi1>
    %29 = vector.broadcast %cst_23 : f32 to vector<4x16xf32>
    %30 = arith.select %28, %26, %29 : vector<4x16xi1>, vector<4x16xf32>
    %31 = arith.truncf %25 : vector<4x16xf32> to vector<4x16xbf16>
    %cst_24 = arith.constant dense<0.000000e+00> : vector<4x16xf32>
    %32 = tpu.matmul %6, %31, %cst_24 {dimension_numbers = #tpu.dot_dimension_numbers<[1], [0], [0], [1], [0, 0, 1, 1], [], []>} : vector<4x4xbf16>, vector<4x16xbf16>, vector<4x16xf32> -> vector<4x16xf32>
    %33 = arith.truncf %20 : vector<4x16xf32> to vector<4x16xbf16>
    %cst_25 = arith.constant dense<0.000000e+00> : vector<4x16xf32>
    %34 = tpu.matmul %8, %33, %cst_25 {dimension_numbers = #tpu.dot_dimension_numbers<[1], [0], [0], [1], [0, 0, 1, 1], [], []>} : vector<4x4xbf16>, vector<4x16xbf16>, vector<4x16xf32> -> vector<4x16xf32>
    %35 = arith.addf %32, %34 : vector<4x16xf32>
    %36 = arith.truncf %30 : vector<4x16xf32> to vector<4x16xbf16>
    %cst_26 = arith.constant dense<0.000000e+00> : vector<4x16xf32>
    %37 = tpu.matmul %10, %36, %cst_26 {dimension_numbers = #tpu.dot_dimension_numbers<[1], [0], [0], [1], [0, 0, 1, 1], [], []>} : vector<4x4xbf16>, vector<4x16xbf16>, vector<4x16xf32> -> vector<4x16xf32>
    %38 = arith.addf %35, %37 : vector<4x16xf32>
    %39 = vector.broadcast %17 : vector<4x1xf32> to vector<4x16xf32>
    %40 = arith.addf %38, %39 : vector<4x16xf32>
    %cst_27 = arith.constant 0.000000e+00 : f32
    %41 = vector.broadcast %cst_27 : f32 to vector<4x16xf32>
    %42 = arith.maximumf %40, %41 : vector<4x16xf32>
    %c1_i32_28 = arith.constant 1 : i32
    %43 = tpu.dynamic_rotate %42 by %c1_i32_28 dim 1 : vector<4x16xf32>, i32 -> vector<4x16xf32>
    %cst_29 = arith.constant 0.000000e+00 : f32
    %44 = vector.shape_cast %2 : vector<1x16xi1> to vector<1x16xi1>
    %45 = vector.broadcast %44 : vector<1x16xi1> to vector<4x16xi1>
    %46 = vector.broadcast %cst_29 : f32 to vector<4x16xf32>
    %47 = arith.select %45, %43, %46 : vector<4x16xi1>, vector<4x16xf32>
    %c15_i32_30 = arith.constant 15 : i32
    %48 = tpu.dynamic_rotate %42 by %c15_i32_30 dim 1 : vector<4x16xf32>, i32 -> vector<4x16xf32>
    %cst_31 = arith.constant 0.000000e+00 : f32
    %49 = vector.shape_cast %4 : vector<1x16xi1> to vector<1x16xi1>
    %50 = vector.broadcast %49 : vector<1x16xi1> to vector<4x16xi1>
    %51 = vector.broadcast %cst_31 : f32 to vector<4x16xf32>
    %52 = arith.select %50, %48, %51 : vector<4x16xi1>, vector<4x16xf32>
    %53 = arith.truncf %47 : vector<4x16xf32> to vector<4x16xbf16>
    %cst_32 = arith.constant dense<0.000000e+00> : vector<4x16xf32>
    %54 = tpu.matmul %12, %53, %cst_32 {dimension_numbers = #tpu.dot_dimension_numbers<[1], [0], [0], [1], [0, 0, 1, 1], [], []>} : vector<4x4xbf16>, vector<4x16xbf16>, vector<4x16xf32> -> vector<4x16xf32>
    %55 = arith.truncf %42 : vector<4x16xf32> to vector<4x16xbf16>
    %cst_33 = arith.constant dense<0.000000e+00> : vector<4x16xf32>
    %56 = tpu.matmul %14, %55, %cst_33 {dimension_numbers = #tpu.dot_dimension_numbers<[1], [0], [0], [1], [0, 0, 1, 1], [], []>} : vector<4x4xbf16>, vector<4x16xbf16>, vector<4x16xf32> -> vector<4x16xf32>
    %57 = arith.addf %54, %56 : vector<4x16xf32>
    %58 = arith.truncf %52 : vector<4x16xf32> to vector<4x16xbf16>
    %cst_34 = arith.constant dense<0.000000e+00> : vector<4x16xf32>
    %59 = tpu.matmul %16, %58, %cst_34 {dimension_numbers = #tpu.dot_dimension_numbers<[1], [0], [0], [1], [0, 0, 1, 1], [], []>} : vector<4x4xbf16>, vector<4x16xbf16>, vector<4x16xf32> -> vector<4x16xf32>
    %60 = arith.addf %57, %59 : vector<4x16xf32>
    %61 = vector.broadcast %18 : vector<4x1xf32> to vector<4x16xf32>
    %62 = arith.addf %60, %61 : vector<4x16xf32>
    %63 = arith.addf %62, %20 : vector<4x16xf32>
    %cst_35 = arith.constant 0.000000e+00 : f32
    %64 = vector.broadcast %cst_35 : f32 to vector<4x16xf32>
    %65 = arith.maximumf %63, %64 : vector<4x16xf32>
    %c0_36 = arith.constant 0 : index
    %c0_37 = arith.constant 0 : index
    %c0_38 = arith.constant 0 : index
    %66 = vector.load %arg6[%c0_36, %c0_37, %c0_38] : memref<1x4x16xf32, #tpu.memory_space<vmem>>, vector<1x4x16xf32>
    %67 = vector.shape_cast %66 : vector<1x4x16xf32> to vector<4x16xf32>
    %68 = vector.shape_cast %65 : vector<4x16xf32> to vector<1x4x16xf32>
    tpu.vector_store %arg6[%c0_36, %c0_37, %c0_38], %68 {strides = array<i32>} : memref<1x4x16xf32, #tpu.memory_space<vmem>>, vector<1x4x16xf32>,
    return
  }
  func.func @transform_0(%arg0: i32) -> (i32, i32, i32) {
    %c0_i32 = arith.constant 0 : i32
    %c0_i32_0 = arith.constant 0 : i32
    %c0_i32_1 = arith.constant 0 : i32
    return %arg0, %c0_i32, %c0_i32_0 : i32, i32, i32
  }
  func.func @transform_1(%arg0: i32) -> (i32, i32, i32) {
    %c0_i32 = arith.constant 0 : i32
    %c0_i32_0 = arith.constant 0 : i32
    %c0_i32_1 = arith.constant 0 : i32
    %c0_i32_2 = arith.constant 0 : i32
    return %c0_i32, %c0_i32_0, %c0_i32_1 : i32, i32, i32
  }
  func.func @transform_2(%arg0: i32) -> (i32, i32, i32) {
    %c0_i32 = arith.constant 0 : i32
    %c0_i32_0 = arith.constant 0 : i32
    %c0_i32_1 = arith.constant 0 : i32
    %c0_i32_2 = arith.constant 0 : i32
    return %c0_i32, %c0_i32_0, %c0_i32_1 : i32, i32, i32
  }
  func.func @transform_3(%arg0: i32) -> (i32, i32) {
    %c0_i32 = arith.constant 0 : i32
    %c0_i32_0 = arith.constant 0 : i32
    %c0_i32_1 = arith.constant 0 : i32
    return %c0_i32, %c0_i32_0 : i32, i32
  }
  func.func @transform_4(%arg0: i32) -> (i32, i32) {
    %c0_i32 = arith.constant 0 : i32
    %c0_i32_0 = arith.constant 0 : i32
    %c0_i32_1 = arith.constant 0 : i32
    return %c0_i32, %c0_i32_0 : i32, i32
  }
  func.func @transform_5(%arg0: i32) -> (i32, i32, i32) {
    %c0_i32 = arith.constant 0 : i32
    %c0_i32_0 = arith.constant 0 : i32
    %c0_i32_1 = arith.constant 0 : i32
    return %arg0, %c0_i32, %c0_i32_0 : i32, i32, i32
  }
}

</mosaic_0001>

<llo_original>
// kernel: tpu_custom_call.1
$region0: #{tpu_custom_call.1}
  #allocation0 [shape = 'u32[]', space=smem, size = 0x4, offset = 0x4, fixed_abs, tag = 'smem constant byte address 0x4 - core index']
  #allocation1 [shape = 'u32[144,128]{1,0:T(1,128)}', space=vmem, size = 0x12000, scoped, tag = 'internal scratch']
  %s0 = inlined_call_operand.vmem [shape: f32[2,4,16], index: 0, kind: input, shape index: {}]
  %s1 = inlined_call_operand.hbm [shape: bf16[3,4,4], index: 1, kind: input, shape index: {}]
  %s2 = inlined_call_operand.vmem [shape: bf16[3,4,4], index: 2, kind: input, shape index: {}]
  %s3 = inlined_call_operand.vmem [shape: f32[4,1], index: 3, kind: input, shape index: {}]
  %s4 = inlined_call_operand.vmem [shape: f32[4,1], index: 4, kind: input, shape index: {}]
  %s5 = inlined_call_operand.hbm [shape: f32[2,4,16], index: 5, kind: output, shape index: {}]
  %s6 = sld [smem:[#allocation0]]
  $region57: #{tpu_custom_call.1} parent=0
    _
  %s8 = ssub.s32 1, %s6
  %s9 = scalar_select 0, %s8, %s6
  $region1: #{tpu_custom_call.1} parent=0
    #allocation2 [shape = 'u8[3072]{0}', space=vmem, size = 0xc00, scoped, tag = 'input window, operand 1, single buffered']
    #allocation3 [shape = 's32[2]{0}', space=sflag, size = 0x8, scoped, tag = 'scoped memory for tpu_custom_call.1']
    #allocation4 [shape = 's32[2]{0}', space=sflag, size = 0x8, scoped, tag = 'scoped memory for tpu_custom_call.1']
    #allocation5 [shape = 'u8[4096]{0}', space=vmem, size = 0x1000, scoped, tag = 'output window, operand 0']
    %10 = vsyncpa [#allocation3], 0
    %11 = vsyncpa [#allocation4], 0
    %s12 = scalar_lea.sflag [#allocation4], 1
    %13 = vsyncpa %s12, 0
    loop: start=0, step=1, limit=4
    $region2: #{tpu_custom_call.1} parent=1 // loop_pre_header
      _
    $region3: #{tpu_custom_call.1} parent=1 // loop_header
      %s15 = sphi 0, %s19
      %p16 = scmp.ge.s32.totalorder %s15, 4
      %s25 = sphi 0, %s27
      %s28 = sphi 0, %s25
      %s29 = sphi 0, %s28
      %s45 = sphi 0, %s29
      %s49 = sphi 0, %s49
      %s51 = sphi 0, %s49
      %s52 = sphi 0, %s51
      %s66 = sphi 0, %s52
      %s70 = sphi 0, %s70
      %s72 = sphi 0, %s70
      %s73 = sphi 0, %s72
      %s87 = sphi 0, %s73
      %s91 = sphi 0, %s91
      %s93 = sphi 0, %s91
      %s94 = sphi 0, %s93
      %s108 = sphi 0, %s94
      %s112 = sphi 0, %s112
      %s114 = sphi 0, %s112
      %s115 = sphi 0, %s114
      %s129 = sphi 0, %s115
      %s135 = sphi 0, %s137
      %s138 = sphi 0, %s135
      %s139 = sphi 0, %s138
      %s155 = sphi 0, %s139
    $region4: #{tpu_custom_call.1} parent=1 // loop_header_branch
      %18 = sbr.rel (%p16) target = $region8
    $region5: #{tpu_custom_call.1} parent=1 // loop_body
      %s20 = ssub.s32 %s15, 1
      %s21 = ssub.s32 %s15, 2
      %s22 = sadd.s32 %s15, 1
      %s23 = ssub.s32 %s15, %s22
      %p24 = scmp.eq.s32.totalorder %s23, 0
      %s26 = sadd.s32 %s25, 1
      %s27 = scalar_select %p24, %s25, %s26
      %p30 = pneg %p24
      %p31 = scmp.eq.s32.totalorder %s15, 1
      %p32 = por %p30, %p31
      %p33 = scmp.ne.s32.totalorder %s25, %s28
      %p34 = scmp.eq.s32.totalorder %s15, 0
      %p35 = por %p33, %p34
      %p36 = scmp.ne.s32.totalorder %s25, %s28
      %p37 = scmp.eq.s32.totalorder %s20, 1
      %p38 = por %p36, %p37
      %p39 = scmp.ne.s32.totalorder %s28, %s29
      %p40 = scmp.eq.s32.totalorder %s20, 0
      %p41 = por %p39, %p40
      %p42 = scmp.ne.s32.totalorder %s28, %s29
      %p43 = scmp.eq.s32.totalorder %s21, 1
      %p44 = por %p42, %p43
      %p46 = scmp.ne.s32.totalorder %s29, %s45
      %p47 = scmp.eq.s32.totalorder %s21, 0
      %p48 = por %p46, %p47
      %s50 = sadd.s32 %s49, 1
      %p53 = scmp.eq.s32.totalorder %s15, 1
      %p54 = scmp.ne.s32.totalorder %s49, %s51
      %p55 = scmp.eq.s32.totalorder %s15, 0
      %p56 = por %p54, %p55
      %p57 = scmp.ne.s32.totalorder %s49, %s51
      %p58 = scmp.eq.s32.totalorder %s20, 1
      %p59 = por %p57, %p58
      %p60 = scmp.ne.s32.totalorder %s51, %s52
      %p61 = scmp.eq.s32.totalorder %s20, 0
      %p62 = por %p60, %p61
      %p63 = scmp.ne.s32.totalorder %s51, %s52
      %p64 = scmp.eq.s32.totalorder %s21, 1
      %p65 = por %p63, %p64
      %p67 = scmp.ne.s32.totalorder %s52, %s66
      %p68 = scmp.eq.s32.totalorder %s21, 0
      %p69 = por %p67, %p68
      %s71 = sadd.s32 %s70, 1
      %p74 = scmp.eq.s32.totalorder %s15, 1
      %p75 = scmp.ne.s32.totalorder %s70, %s72
      %p76 = scmp.eq.s32.totalorder %s15, 0
      %p77 = por %p75, %p76
      %p78 = scmp.ne.s32.totalorder %s70, %s72
      %p79 = scmp.eq.s32.totalorder %s20, 1
      %p80 = por %p78, %p79
      %p81 = scmp.ne.s32.totalorder %s72, %s73
      %p82 = scmp.eq.s32.totalorder %s20, 0
      %p83 = por %p81, %p82
      %p84 = scmp.ne.s32.totalorder %s72, %s73
      %p85 = scmp.eq.s32.totalorder %s21, 1
      %p86 = por %p84, %p85
      %p88 = scmp.ne.s32.totalorder %s73, %s87
      %p89 = scmp.eq.s32.totalorder %s21, 0
      %p90 = por %p88, %p89
      %s92 = sadd.s32 %s91, 1
      %p95 = scmp.eq.s32.totalorder %s15, 1
      %p96 = scmp.ne.s32.totalorder %s91, %s93
      %p97 = scmp.eq.s32.totalorder %s15, 0
      %p98 = por %p96, %p97
      %p99 = scmp.ne.s32.totalorder %s91, %s93
      %p100 = scmp.eq.s32.totalorder %s20, 1
      %p101 = por %p99, %p100
      %p102 = scmp.ne.s32.totalorder %s93, %s94
      %p103 = scmp.eq.s32.totalorder %s20, 0
      %p104 = por %p102, %p103
      %p105 = scmp.ne.s32.totalorder %s93, %s94
      %p106 = scmp.eq.s32.totalorder %s21, 1
      %p107 = por %p105, %p106
      %p109 = scmp.ne.s32.totalorder %s94, %s108
      %p110 = scmp.eq.s32.totalorder %s21, 0
      %p111 = por %p109, %p110
      %s113 = sadd.s32 %s112, 1
      %p116 = scmp.eq.s32.totalorder %s15, 1
      %p117 = scmp.ne.s32.totalorder %s112, %s114
      %p118 = scmp.eq.s32.totalorder %s15, 0
      %p119 = por %p117, %p118
      %p120 = scmp.ne.s32.totalorder %s112, %s114
      %p121 = scmp.eq.s32.totalorder %s20, 1
      %p122 = por %p120, %p121
      %p123 = scmp.ne.s32.totalorder %s114, %s115
      %p124 = scmp.eq.s32.totalorder %s20, 0
      %p125 = por %p123, %p124
      %p126 = scmp.ne.s32.totalorder %s114, %s115
      %p127 = scmp.eq.s32.totalorder %s21, 1
      %p128 = por %p126, %p127
      %p130 = scmp.ne.s32.totalorder %s115, %s129
      %p131 = scmp.eq.s32.totalorder %s21, 0
      %p132 = por %p130, %p131
      %s133 = ssub.s32 %s15, %s22
      %p134 = scmp.eq.s32.totalorder %s133, 0
      %s136 = sadd.s32 %s135, 1
      %s137 = scalar_select %p134, %s135, %s136
      %p140 = pneg %p134
      %p141 = scmp.eq.s32.totalorder %s15, 1
      %p142 = por %p140, %p141
      %p143 = scmp.ne.s32.totalorder %s135, %s138
      %p144 = scmp.eq.s32.totalorder %s15, 0
      %p145 = por %p143, %p144
      %p146 = scmp.ne.s32.totalorder %s135, %s138
      %p147 = scmp.eq.s32.totalorder %s20, 1
      %p148 = por %p146, %p147
      %p149 = scmp.ne.s32.totalorder %s138, %s139
      %p150 = scmp.eq.s32.totalorder %s20, 0
      %p151 = por %p149, %p150
      %p152 = scmp.ne.s32.totalorder %s138, %s139
      %p153 = scmp.eq.s32.totalorder %s21, 1
      %p154 = por %p152, %p153
      %p156 = scmp.ne.s32.totalorder %s139, %s155
      %p157 = scmp.eq.s32.totalorder %s21, 0
      %p158 = por %p156, %p157
      %p159 = scmp.le.s32.totalorder 1, %s15
      %p160 = scmp.lt.s32.totalorder %s15, 3
      %p161 = pnand %p159, %p160
      %p162 = pneg %p161
      // Predicated region
      $region9: #{tpu_custom_call.1} parent=5 // pred_check
        _
      $region10: #{tpu_custom_call.1} parent=5 // pred_check_branch
        %164 = sbr.rel (%p161) target = $region12
      $region11: #{tpu_custom_call.1} parent=5 // pred_region
        %s165 = ssub.s32 %s15, 1
        // Predicated region
        $region13: #{tpu_custom_call.1} parent=11 // pred_check
          %p166 = pneg %p62
        $region14: #{tpu_custom_call.1} parent=11 // pred_check_branch
          %168 = sbr.rel (%p166) target = $region16
        $region15: #{tpu_custom_call.1} parent=11 // pred_region
          %s170 = ssub.s32 96, 96
          %171 = vsyncadd [#allocation3], %s170
          %s172 = sshll.u32 [#allocation2], 4
          %s173 = int_to_ptr.vmem [resolvable:$true] %s172
          %178 = dma.hbm_to_vmem [thread:$0]  %s1, 96, %s173, [#allocation3], 32, 32, 2
        $region16: #{tpu_custom_call.1} parent=11 // pred_fallthru
          _
        // Predicated region
        $region17: #{tpu_custom_call.1} parent=11 // pred_check
          %p179 = pneg %p83
        $region18: #{tpu_custom_call.1} parent=11 // pred_check_branch
          %181 = sbr.rel (%p179) target = $region20
        $region19: #{tpu_custom_call.1} parent=11 // pred_region
          _
        $region20: #{tpu_custom_call.1} parent=11 // pred_fallthru
          _
        // Predicated region
        $region21: #{tpu_custom_call.1} parent=11 // pred_check
          %p182 = pneg %p104
        $region22: #{tpu_custom_call.1} parent=11 // pred_check_branch
          %184 = sbr.rel (%p182) target = $region24
        $region23: #{tpu_custom_call.1} parent=11 // pred_region
          _
        $region24: #{tpu_custom_call.1} parent=11 // pred_fallthru
          _
        // Predicated region
        $region25: #{tpu_custom_call.1} parent=11 // pred_check
          %p185 = pneg %p125
        $region26: #{tpu_custom_call.1} parent=11 // pred_check_branch
          %187 = sbr.rel (%p185) target = $region28
        $region27: #{tpu_custom_call.1} parent=11 // pred_region
          _
        $region28: #{tpu_custom_call.1} parent=11 // pred_fallthru
          _
      $region12: #{tpu_custom_call.1} parent=5 // pred_fallthru
        _
      %p188 = scmp.lt.s32.totalorder %s15, 2
      // Predicated region
      $region29: #{tpu_custom_call.1} parent=5 // pred_check
        %p189 = pneg %p188
      $region30: #{tpu_custom_call.1} parent=5 // pred_check_branch
        %191 = sbr.rel (%p189) target = $region32
      $region31: #{tpu_custom_call.1} parent=5 // pred_region
        // Predicated region
        $region33: #{tpu_custom_call.1} parent=31 // pred_check
          %p192 = pneg %p35
        $region34: #{tpu_custom_call.1} parent=31 // pred_check_branch
          %194 = sbr.rel (%p192) target = $region36
        $region35: #{tpu_custom_call.1} parent=31 // pred_region
          %p195 = scmp.lt.s32.totalorder %s15, 1
          %s196 = scalar_select %p195, %s15, 1
          %s197 = smul.addr %s196, 4
          %s198 = scalar_lea.vmem %s0, %s197
        $region36: #{tpu_custom_call.1} parent=31 // pred_fallthru
          _
      $region32: #{tpu_custom_call.1} parent=5 // pred_fallthru
        _
      %p199 = scmp.le.s32.totalorder 1, %s15
      %p200 = scmp.lt.s32.totalorder %s15, 3
      %p201 = pnand %p199, %p200
      %p202 = pneg %p201
      // Predicated region
      $region37: #{tpu_custom_call.1} parent=5 // pred_check
        _
      $region38: #{tpu_custom_call.1} parent=5 // pred_check_branch
        %204 = sbr.rel (%p201) target = $region40
      $region39: #{tpu_custom_call.1} parent=5 // pred_region
        %s205 = ssub.s32 %s15, 1
        // Predicated region
        $region41: #{tpu_custom_call.1} parent=39 // pred_check
          %p206 = pneg %p62
        $region42: #{tpu_custom_call.1} parent=39 // pred_check_branch
          %208 = sbr.rel (%p206) target = $region44
        $region43: #{tpu_custom_call.1} parent=39 // pred_region
          %209 = dma.done [#allocation3], 96
        $region44: #{tpu_custom_call.1} parent=39 // pred_fallthru
          _
        %p210 = scmp.lt.s32.totalorder %s20, 1
        %s211 = scalar_select %p210, %s20, 1
        %s212 = smul.addr %s211, 4
        %s213 = scalar_lea.vmem %s0, %s212
        %p214 = pneg %p41
        %p215 = pneg %p38
        %p216 = pneg %p62
        %p217 = pneg %p59
        %p218 = pneg %p83
        %p219 = pneg %p80
        %p220 = pneg %p104
        %p221 = pneg %p101
        %p222 = pneg %p125
        %p223 = pneg %p122
        %p224 = pneg %p151
        %p225 = pneg %p148
        %s226 = sand.u32 %s138, 1
        %s227 = scalar_lea.sflag [#allocation4], %s226
        %s228 = sand.u32 %s138, 1
        %s229 = smul.addr %s228, 4
        %s230 = scalar_lea.vmem [#allocation5], %s229
        %p231 = scmp.lt.s32.totalorder %s20, 1
        %s232 = scalar_select %p231, %s20, 1
        %s233 = smul.addr %s232, 4
        %s234 = scalar_lea.vmem %s0, %s233
        %v236 = vlaneseq
        %v237 = vand.u32 %v236, 127
        %vm238 = vcmp.ne.s32.totalorder %v237, 0
        %vm239 = vcmp.ne.s32.totalorder %v237, 15
        %v240 = vld [vmem:[#allocation2] sm:$0x3]
        %s241 = scalar_lea.vmem [#allocation2], 2
        %v242 = vld [vmem:[%s241] sm:$0x3]
        %s243 = scalar_lea.vmem [#allocation2], 4
        %v244 = vld [vmem:[%s243] sm:$0x3]
        %v245 = vld [vmem:[%s2] sm:$0x3]
        %s246 = scalar_lea.vmem %s2, 2
        %v247 = vld [vmem:[%s246] sm:$0x3]
        %s248 = scalar_lea.vmem %s2, 4
        %v249 = vld [vmem:[%s248] sm:$0x3]
        %v250 = vld [vmem:[%s3] sm:$0xf]
        %v251 = vld [vmem:[%s4] sm:$0xf]
        %v252 = vld [vmem:[%s234] sm:$0xf]
        %vm253 = vcmask 1047680
        %254 = vrot.lane.b32.xlu0 %v252, 16
        %v255 = vpop.permute.xlu0 %254
        %v256 = vsel %vm253, %v255, %v252
        %257 = vrot.lane.b32.xlu0 %v256, 16
        %v258 = vpop.permute.xlu0 %257
        %v259 = vsel %vm253, %v258, %v252
        %v260 = vsel %vm238, 1, 0
        %vm261 = vcmp.eq.s32.totalorder %v260, 1
        %263 = vrot.lane.b32.xlu0 %v259, 113
        %v264 = vpop.permute.xlu0 %263
        %v266 = vsel %vm261, %v264, 0.0
        %v267 = vsel %vm239, 1, 0
        %vm268 = vcmp.eq.s32.totalorder %v267, 1
        %269 = vrot.lane.b32.xlu0 %v259, 127
        %v270 = vpop.permute.xlu0 %269
        %v272 = vsel %vm268, %v270, 0.0
        %v273 = vpack.c.bf16 %v266, %v266
        %v274 = vpack.c.bf16 %v252, %v252
        %vm275 = vcmask 31744
        %v277 = vsel %vm275, %v242, 0
        %vm279 = vcmask 1041408
        %v281 = vsel %vm279, %v274, 0
        %283 = vmatprep.subr.bf16.mxu0 0
        %284 = vmatpush1.bf16.msra.mxu0 %v281
        %285 = vmatprep.subr.bf16.mxu0 0
        %286 = vmatpush1.bf16.msra.mxu0 0
        %287 = vmatprep.subr.bf16.mxu0 0
        %288 = vmatpush1.bf16.msra.mxu0 0
        %289 = vmatprep.subr.bf16.mxu0 0
        %290 = vmatpush1.bf16.msra.mxu0 0
        %291 = vmatprep.subr.bf16.mxu0 0
        %292 = vmatpush1.bf16.msra.mxu0 0
        %293 = vmatprep.subr.bf16.mxu0 0
        %294 = vmatpush1.bf16.msra.mxu0 0
        %295 = vmatprep.subr.bf16.mxu0 0
        %296 = vmatpush1.bf16.msra.mxu0 0
        %297 = vmatprep.subr.bf16.mxu0 0
        %298 = vmatpush1.bf16.msra.mxu0 0
        %299 = vmatprep.subr.bf16.mxu0 0
        %300 = vmatpush1.bf16.msra.mxu0 0
        %301 = vmatprep.subr.bf16.mxu0 0
        %302 = vmatpush1.bf16.msra.mxu0 0
        %303 = vmatprep.subr.bf16.mxu0 0
        %304 = vmatpush1.bf16.msra.mxu0 0
        %305 = vmatprep.subr.bf16.mxu0 0
        %306 = vmatpush1.bf16.msra.mxu0 0
        %307 = vmatprep.subr.bf16.mxu0 0
        %308 = vmatpush1.bf16.msra.mxu0 0
        %309 = vmatprep.subr.bf16.mxu0 0
        %310 = vmatpush1.bf16.msra.mxu0 0
        %311 = vmatprep.subr.bf16.mxu0 0
        %312 = vmatpush1.bf16.msra.mxu0 0
        %313 = vmatprep.subr.bf16.mxu0 0
        %314 = vmatpush1.bf16.msra.mxu0 0
        %315 = vmatprep.mubr.bf16.mxu0 0
        %316 = vmatmul.mubr.bf16.gmra.mrb[0].mxu0 %v277
        %v317 = vpop.f32.mrb[0].mxu0
        %v318 = vadd.f32 0.0, %v317
        %v319 = vpop.f32.mrb[0].mxu0
        %v320 = vpop.f32.mrb[0].mxu0
        %v321 = vpop.f32.mrb[0].mxu0
        %322 = vdwg.mxu0
        %v324 = vsel %vm275, %v240, 0
        %v327 = vsel %vm279, %v273, 0
        %329 = vmatprep.subr.bf16.mxu0 0
        %330 = vmatpush1.bf16.msra.mxu0 %v327
        %331 = vmatprep.subr.bf16.mxu0 0
        %332 = vmatpush1.bf16.msra.mxu0 0
        %333 = vmatprep.subr.bf16.mxu0 0
        %334 = vmatpush1.bf16.msra.mxu0 0
        %335 = vmatprep.subr.bf16.mxu0 0
        %336 = vmatpush1.bf16.msra.mxu0 0
        %337 = vmatprep.subr.bf16.mxu0 0
        %338 = vmatpush1.bf16.msra.mxu0 0
        %339 = vmatprep.subr.bf16.mxu0 0
        %340 = vmatpush1.bf16.msra.mxu0 0
        %341 = vmatprep.subr.bf16.mxu0 0
        %342 = vmatpush1.bf16.msra.mxu0 0
        %343 = vmatprep.subr.bf16.mxu0 0
        %344 = vmatpush1.bf16.msra.mxu0 0
        %345 = vmatprep.subr.bf16.mxu0 0
        %346 = vmatpush1.bf16.msra.mxu0 0
        %347 = vmatprep.subr.bf16.mxu0 0
        %348 = vmatpush1.bf16.msra.mxu0 0
        %349 = vmatprep.subr.bf16.mxu0 0
        %350 = vmatpush1.bf16.msra.mxu0 0
        %351 = vmatprep.subr.bf16.mxu0 0
        %352 = vmatpush1.bf16.msra.mxu0 0
        %353 = vmatprep.subr.bf16.mxu0 0
        %354 = vmatpush1.bf16.msra.mxu0 0
        %355 = vmatprep.subr.bf16.mxu0 0
        %356 = vmatpush1.bf16.msra.mxu0 0
        %357 = vmatprep.subr.bf16.mxu0 0
        %358 = vmatpush1.bf16.msra.mxu0 0
        %359 = vmatprep.subr.bf16.mxu0 0
        %360 = vmatpush1.bf16.msra.mxu0 0
        %361 = vmatprep.mubr.bf16.mxu0 0
        %362 = vmatmul.mubr.bf16.gmra.mrb[0].mxu0 %v324
        %v363 = vpop.f32.mrb[0].mxu0
        %v364 = vadd.f32 %v318, %v363
        %v365 = vpop.f32.mrb[0].mxu0
        %v366 = vpop.f32.mrb[0].mxu0
        %v367 = vpop.f32.mrb[0].mxu0
        %368 = vdwg.mxu0
        %v369 = vpack.c.bf16 %v272, %v272
        %v371 = vsel %vm275, %v244, 0
        %v374 = vsel %vm279, %v369, 0
        %376 = vmatprep.subr.bf16.mxu0 0
        %377 = vmatpush1.bf16.msra.mxu0 %v374
        %378 = vmatprep.subr.bf16.mxu0 0
        %379 = vmatpush1.bf16.msra.mxu0 0
        %380 = vmatprep.subr.bf16.mxu0 0
        %381 = vmatpush1.bf16.msra.mxu0 0
        %382 = vmatprep.subr.bf16.mxu0 0
        %383 = vmatpush1.bf16.msra.mxu0 0
        %384 = vmatprep.subr.bf16.mxu0 0
        %385 = vmatpush1.bf16.msra.mxu0 0
        %386 = vmatprep.subr.bf16.mxu0 0
        %387 = vmatpush1.bf16.msra.mxu0 0
        %388 = vmatprep.subr.bf16.mxu0 0
        %389 = vmatpush1.bf16.msra.mxu0 0
        %390 = vmatprep.subr.bf16.mxu0 0
        %391 = vmatpush1.bf16.msra.mxu0 0
        %392 = vmatprep.subr.bf16.mxu0 0
        %393 = vmatpush1.bf16.msra.mxu0 0
        %394 = vmatprep.subr.bf16.mxu0 0
        %395 = vmatpush1.bf16.msra.mxu0 0
        %396 = vmatprep.subr.bf16.mxu0 0
        %397 = vmatpush1.bf16.msra.mxu0 0
        %398 = vmatprep.subr.bf16.mxu0 0
        %399 = vmatpush1.bf16.msra.mxu0 0
        %400 = vmatprep.subr.bf16.mxu0 0
        %401 = vmatpush1.bf16.msra.mxu0 0
        %402 = vmatprep.subr.bf16.mxu0 0
        %403 = vmatpush1.bf16.msra.mxu0 0
        %404 = vmatprep.subr.bf16.mxu0 0
        %405 = vmatpush1.bf16.msra.mxu0 0
        %406 = vmatprep.subr.bf16.mxu0 0
        %407 = vmatpush1.bf16.msra.mxu0 0
        %408 = vmatprep.mubr.bf16.mxu0 0
        %409 = vmatmul.mubr.bf16.gmra.mrb[0].mxu0 %v371
        %v410 = vpop.f32.mrb[0].mxu0
        %v411 = vadd.f32 0.0, %v410
        %v412 = vpop.f32.mrb[0].mxu0
        %v413 = vpop.f32.mrb[0].mxu0
        %v414 = vpop.f32.mrb[0].mxu0
        %415 = vdwg.mxu0
        %v416 = vadd.f32 %v364, %v411
        %418 = vset.pattern.permute.xlu0 0
        %419 = vperm.xlu0 %418, %v250
        %v420 = vpop.permute.xlu0 %419
        %v422 = vadd.f32 %v416, %v420
        %v423 = vmax.f32 %v422, 0.0
        %424 = vrot.lane.b32.xlu0 %v423, 16
        %v425 = vpop.permute.xlu0 %424
        %v426 = vsel %vm253, %v425, %v423
        %427 = vrot.lane.b32.xlu0 %v426, 16
        %v428 = vpop.permute.xlu0 %427
        %v429 = vsel %vm253, %v428, %v423
        %431 = vrot.lane.b32.xlu0 %v429, 113
        %v432 = vpop.permute.xlu0 %431
        %v434 = vsel %vm261, %v432, 0.0
        %435 = vrot.lane.b32.xlu0 %v429, 127
        %v436 = vpop.permute.xlu0 %435
        %v438 = vsel %vm268, %v436, 0.0
        %v439 = vpack.c.bf16 %v434, %v434
        %v440 = vpack.c.bf16 %v423, %v423
        %v442 = vsel %vm275, %v247, 0
        %v445 = vsel %vm279, %v440, 0
        %447 = vmatprep.subr.bf16.mxu0 0
        %448 = vmatpush1.bf16.msra.mxu0 %v445
        %449 = vmatprep.subr.bf16.mxu0 0
        %450 = vmatpush1.bf16.msra.mxu0 0
        %451 = vmatprep.subr.bf16.mxu0 0
        %452 = vmatpush1.bf16.msra.mxu0 0
        %453 = vmatprep.subr.bf16.mxu0 0
        %454 = vmatpush1.bf16.msra.mxu0 0
        %455 = vmatprep.subr.bf16.mxu0 0
        %456 = vmatpush1.bf16.msra.mxu0 0
        %457 = vmatprep.subr.bf16.mxu0 0
        %458 = vmatpush1.bf16.msra.mxu0 0
        %459 = vmatprep.subr.bf16.mxu0 0
        %460 = vmatpush1.bf16.msra.mxu0 0
        %461 = vmatprep.subr.bf16.mxu0 0
        %462 = vmatpush1.bf16.msra.mxu0 0
        %463 = vmatprep.subr.bf16.mxu0 0
        %464 = vmatpush1.bf16.msra.mxu0 0
        %465 = vmatprep.subr.bf16.mxu0 0
        %466 = vmatpush1.bf16.msra.mxu0 0
        %467 = vmatprep.subr.bf16.mxu0 0
        %468 = vmatpush1.bf16.msra.mxu0 0
        %469 = vmatprep.subr.bf16.mxu0 0
        %470 = vmatpush1.bf16.msra.mxu0 0
        %471 = vmatprep.subr.bf16.mxu0 0
        %472 = vmatpush1.bf16.msra.mxu0 0
        %473 = vmatprep.subr.bf16.mxu0 0
        %474 = vmatpush1.bf16.msra.mxu0 0
        %475 = vmatprep.subr.bf16.mxu0 0
        %476 = vmatpush1.bf16.msra.mxu0 0
        %477 = vmatprep.subr.bf16.mxu0 0
        %478 = vmatpush1.bf16.msra.mxu0 0
        %479 = vmatprep.mubr.bf16.mxu0 0
        %480 = vmatmul.mubr.bf16.gmra.mrb[0].mxu0 %v442
        %v481 = vpop.f32.mrb[0].mxu0
        %v482 = vadd.f32 0.0, %v481
        %v483 = vpop.f32.mrb[0].mxu0
        %v484 = vpop.f32.mrb[0].mxu0
        %v485 = vpop.f32.mrb[0].mxu0
        %486 = vdwg.mxu0
        %v488 = vsel %vm275, %v245, 0
        %v491 = vsel %vm279, %v439, 0
        %493 = vmatprep.subr.bf16.mxu0 0
        %494 = vmatpush1.bf16.msra.mxu0 %v491
        %495 = vmatprep.subr.bf16.mxu0 0
        %496 = vmatpush1.bf16.msra.mxu0 0
        %497 = vmatprep.subr.bf16.mxu0 0
        %498 = vmatpush1.bf16.msra.mxu0 0
        %499 = vmatprep.subr.bf16.mxu0 0
        %500 = vmatpush1.bf16.msra.mxu0 0
        %501 = vmatprep.subr.bf16.mxu0 0
        %502 = vmatpush1.bf16.msra.mxu0 0
        %503 = vmatprep.subr.bf16.mxu0 0
        %504 = vmatpush1.bf16.msra.mxu0 0
        %505 = vmatprep.subr.bf16.mxu0 0
        %506 = vmatpush1.bf16.msra.mxu0 0
        %507 = vmatprep.subr.bf16.mxu0 0
        %508 = vmatpush1.bf16.msra.mxu0 0
        %509 = vmatprep.subr.bf16.mxu0 0
        %510 = vmatpush1.bf16.msra.mxu0 0
        %511 = vmatprep.subr.bf16.mxu0 0
        %512 = vmatpush1.bf16.msra.mxu0 0
        %513 = vmatprep.subr.bf16.mxu0 0
        %514 = vmatpush1.bf16.msra.mxu0 0
        %515 = vmatprep.subr.bf16.mxu0 0
        %516 = vmatpush1.bf16.msra.mxu0 0
        %517 = vmatprep.subr.bf16.mxu0 0
        %518 = vmatpush1.bf16.msra.mxu0 0
        %519 = vmatprep.subr.bf16.mxu0 0
        %520 = vmatpush1.bf16.msra.mxu0 0
        %521 = vmatprep.subr.bf16.mxu0 0
        %522 = vmatpush1.bf16.msra.mxu0 0
        %523 = vmatprep.subr.bf16.mxu0 0
        %524 = vmatpush1.bf16.msra.mxu0 0
        %525 = vmatprep.mubr.bf16.mxu0 0
        %526 = vmatmul.mubr.bf16.gmra.mrb[0].mxu0 %v488
        %v527 = vpop.f32.mrb[0].mxu0
        %v528 = vadd.f32 %v482, %v527
        %v529 = vpop.f32.mrb[0].mxu0
        %v530 = vpop.f32.mrb[0].mxu0
        %v531 = vpop.f32.mrb[0].mxu0
        %532 = vdwg.mxu0
        %v533 = vpack.c.bf16 %v438, %v438
        %v535 = vsel %vm275, %v249, 0
        %v538 = vsel %vm279, %v533, 0
        %540 = vmatprep.subr.bf16.mxu0 0
        %541 = vmatpush1.bf16.msra.mxu0 %v538
        %542 = vmatprep.subr.bf16.mxu0 0
        %543 = vmatpush1.bf16.msra.mxu0 0
        %544 = vmatprep.subr.bf16.mxu0 0
        %545 = vmatpush1.bf16.msra.mxu0 0
        %546 = vmatprep.subr.bf16.mxu0 0
        %547 = vmatpush1.bf16.msra.mxu0 0
        %548 = vmatprep.subr.bf16.mxu0 0
        %549 = vmatpush1.bf16.msra.mxu0 0
        %550 = vmatprep.subr.bf16.mxu0 0
        %551 = vmatpush1.bf16.msra.mxu0 0
        %552 = vmatprep.subr.bf16.mxu0 0
        %553 = vmatpush1.bf16.msra.mxu0 0
        %554 = vmatprep.subr.bf16.mxu0 0
        %555 = vmatpush1.bf16.msra.mxu0 0
        %556 = vmatprep.subr.bf16.mxu0 0
        %557 = vmatpush1.bf16.msra.mxu0 0
        %558 = vmatprep.subr.bf16.mxu0 0
        %559 = vmatpush1.bf16.msra.mxu0 0
        %560 = vmatprep.subr.bf16.mxu0 0
        %561 = vmatpush1.bf16.msra.mxu0 0
        %562 = vmatprep.subr.bf16.mxu0 0
        %563 = vmatpush1.bf16.msra.mxu0 0
        %564 = vmatprep.subr.bf16.mxu0 0
        %565 = vmatpush1.bf16.msra.mxu0 0
        %566 = vmatprep.subr.bf16.mxu0 0
        %567 = vmatpush1.bf16.msra.mxu0 0
        %568 = vmatprep.subr.bf16.mxu0 0
        %569 = vmatpush1.bf16.msra.mxu0 0
        %570 = vmatprep.subr.bf16.mxu0 0
        %571 = vmatpush1.bf16.msra.mxu0 0
        %572 = vmatprep.mubr.bf16.mxu0 0
        %573 = vmatmul.mubr.bf16.gmra.mrb[0].mxu0 %v535
        %v574 = vpop.f32.mrb[0].mxu0
        %v575 = vadd.f32 0.0, %v574
        %v576 = vpop.f32.mrb[0].mxu0
        %v577 = vpop.f32.mrb[0].mxu0
        %v578 = vpop.f32.mrb[0].mxu0
        %579 = vdwg.mxu0
        %v580 = vadd.f32 %v528, %v575
        %582 = vset.pattern.permute.xlu0 0
        %583 = vperm.xlu0 %582, %v251
        %v584 = vpop.permute.xlu0 %583
        %v586 = vadd.f32 %v580, %v584
        %v587 = vadd.f32 %v586, %v252
        %v588 = vmax.f32 %v587, 0.0
        %vm589 = vcmask 125952
        %590 = vst.msk [vmem:[%s230] sm:$0xf] %vm589, %v588
        %s591 = sand.u32 %s138, 1
        %s592 = scalar_lea.sflag [#allocation4], %s591
        %s593 = sand.u32 %s138, 1
        %s594 = smul.addr %s593, 4
        %s595 = scalar_lea.vmem [#allocation5], %s594
        // Predicated region
        $region45: #{tpu_custom_call.1} parent=39 // pred_check
          %p596 = pneg %p148
        $region46: #{tpu_custom_call.1} parent=39 // pred_check_branch
          %598 = sbr.rel (%p596) target = $region48
        $region47: #{tpu_custom_call.1} parent=39 // pred_region
          %s600 = ssub.s32 64, 64
          %601 = vsyncadd %s592, %s600
          %s602 = smul.addr %s20, 64
          %s603 = scalar_lea.hbm %s5, %s602
          %s605 = sshll.u32 %s595, 4
          %s606 = int_to_ptr.vmem [resolvable:$true] %s605
          %608 = dma.vmem_to_hbm [thread:$0]  %s606, 64, %s603, %s592
        $region48: #{tpu_custom_call.1} parent=39 // pred_fallthru
          _
      $region40: #{tpu_custom_call.1} parent=5 // pred_fallthru
        _
      %p609 = scmp.le.s32.totalorder 2, %s15
      // Predicated region
      $region49: #{tpu_custom_call.1} parent=5 // pred_check
        %p610 = pneg %p609
      $region50: #{tpu_custom_call.1} parent=5 // pred_check_branch
        %612 = sbr.rel (%p610) target = $region52
      $region51: #{tpu_custom_call.1} parent=5 // pred_region
        %s613 = ssub.s32 %s15, 2
        // Predicated region
        $region53: #{tpu_custom_call.1} parent=51 // pred_check
          %p614 = pneg %p154
        $region54: #{tpu_custom_call.1} parent=51 // pred_check_branch
          %616 = sbr.rel (%p614) target = $region56
        $region55: #{tpu_custom_call.1} parent=51 // pred_region
          %s617 = sand.u32 %s139, 1
          %s618 = scalar_lea.sflag [#allocation4], %s617
          %s619 = sand.u32 %s139, 1
          %s620 = smul.addr %s619, 4
          %s621 = scalar_lea.vmem [#allocation5], %s620
          %622 = dma.done %s618, 64
        $region56: #{tpu_custom_call.1} parent=51 // pred_fallthru
          _
      $region52: #{tpu_custom_call.1} parent=5 // pred_fallthru
        _
    $region6: #{tpu_custom_call.1} parent=1 // loop_footer
      %s19 = sadd.s32 1, %s15
    $region7: #{tpu_custom_call.1} parent=1 // loop_footer_branch
      %14 = sbr.rel target = $region3
    $region8: #{tpu_custom_call.1} parent=1 // loop_exit
      _
    %623 = vsyncpa [#allocation3], 1
    %s624 = scalar_lea.sflag [#allocation3], 1
    %625 = vsyncpa %s624, 1
    %626 = vsyncpa [#allocation4], 1
    %s627 = scalar_lea.sflag [#allocation4], 1
    %628 = vsyncpa %s627, 1

</llo_original>
